<compile_context>
chip_gen: v7x
topology: tpu7x:2x2x1
jax: 0.10.0
libtpu: 0.0.40
codegen_flags: <defaults>
</compile_context>

<pallas_src>
import functools

import jax
import jax.numpy as jnp
from jax.experimental import pallas as pl
from jax.experimental.pallas import tpu as pltpu

EPS = 1e-5  # nn.LayerNorm default


def prenorm_kernel(x_ref, g_ref, b_ref, w_ref, wb_ref, o_ref, y_ref):
    # x_ref : (tm, D)   input rows (VMEM-resident across the j axis)
    # g_ref, b_ref : (1, D)  LayerNorm gamma / beta (f32)
    # w_ref : (D, tn)   bf16 weight tile for output columns [j*tn, (j+1)*tn)
    # wb_ref: (1, tn)   linear bias tile (f32)
    # o_ref : (tm, tn)  output tile
    # y_ref : (tm, D)   bf16 scratch holding the normalized rows
    j = pl.program_id(1)

    @pl.when(j == 0)
    def _():
        # LayerNorm in f32, computed once per row tile, re-used for all N tiles.
        x = x_ref[...].astype(jnp.float32)
        mean = jnp.mean(x, axis=-1, keepdims=True)
        xc = x - mean
        var = jnp.mean(xc * xc, axis=-1, keepdims=True)
        inv = jax.lax.rsqrt(var + EPS)
        y = xc * inv * g_ref[...] + b_ref[...]
        y_ref[...] = y.astype(y_ref.dtype)

    # fn = Linear(D, D): bf16 MXU operands, f32 accumulation.
    out = jnp.dot(y_ref[...], w_ref[...], preferred_element_type=jnp.float32)
    out = out + wb_ref[...]
    o_ref[...] = out.astype(o_ref.dtype)


def _round_up(n, m):
    return (n + m - 1) // m * m


def _pick_tile_n(D, want):
    want = min(want, D)
    if want % 128 == 0 and D % want == 0:
        return want
    for tn in (512, 256, 128):
        if tn <= D and D % tn == 0:
            return tn
    return D


@functools.partial(jax.jit, static_argnames=("tile_rows", "tile_n"))
def prenorm(x, gamma, beta, w, wb, *, tile_rows=256, tile_n=256):
    """x: (B, S, D) -> (B, S, D).  LayerNorm(D) followed by Linear(D, D)."""
    B, S, D = x.shape
    assert D % 128 == 0, "embed_dim must be a multiple of 128 (lane-dense)"
    R = B * S

    # Row tile: large (MXU-friendly), 16-aligned (bf16 scratch sublane packing),
    # clipped to the actual (rounded-up) row count so tiny inputs don't over-pad.
    tm = min(tile_rows, _round_up(R, 16))
    tm = _round_up(tm, 16)
    tn = _pick_tile_n(D, tile_n)

    R_pad = _round_up(R, tm)
    x2 = x.reshape(R, D)
    if R_pad != R:
        x2 = jnp.pad(x2, ((0, R_pad - R), (0, 0)))

    g2 = gamma.reshape(1, D).astype(jnp.float32)
    b2 = beta.reshape(1, D).astype(jnp.float32)
    wb2 = wb.reshape(1, D).astype(jnp.float32)
    w_bf16 = w.astype(jnp.bfloat16)  # halves weight DMA/VMEM; MXU acc stays f32

    grid = (R_pad // tm, D // tn)

    flops = 2 * R_pad * D * D + 8 * R_pad * D
    bytes_accessed = (
        R_pad * D * x2.dtype.itemsize      # x in
        + D * D * 2                        # bf16 weight
        + R_pad * D * x.dtype.itemsize     # out
        + 3 * D * 4                        # gamma / beta / linear bias
    )

    out = pl.pallas_call(
        prenorm_kernel,
        out_shape=jax.ShapeDtypeStruct((R_pad, D), x.dtype),
        grid=grid,
        in_specs=[
            pl.BlockSpec((tm, D), lambda i, j: (i, 0)),   # x rows (resident over j)
            pl.BlockSpec((1, D), lambda i, j: (0, 0)),    # gamma
            pl.BlockSpec((1, D), lambda i, j: (0, 0)),    # beta
            pl.BlockSpec((D, tn), lambda i, j: (0, j)),   # bf16 weight N tile
            pl.BlockSpec((1, tn), lambda i, j: (0, j)),   # linear bias N tile
        ],
        out_specs=pl.BlockSpec((tm, tn), lambda i, j: (i, j)),
        scratch_shapes=[pltpu.VMEM((tm, D), jnp.bfloat16)],  # normalized rows
        compiler_params=pltpu.CompilerParams(
            dimension_semantics=("parallel", "arbitrary"),
            vmem_limit_bytes=48 * 1024 * 1024,
        ),
        cost_estimate=pl.CostEstimate(
            flops=flops, transcendentals=R_pad, bytes_accessed=bytes_accessed
        ),
    )(x2, g2, b2, w_bf16, wb2)

    return out[:R].reshape(B, S, D)


def prenorm_ref_f32(x, gamma, beta, w, wb):
    """Full-f32 PyTorch-semantics reference."""
    xf = x.astype(jnp.float32)
    mean = jnp.mean(xf, axis=-1, keepdims=True)
    var = jnp.mean((xf - mean) ** 2, axis=-1, keepdims=True)
    y = (xf - mean) * jax.lax.rsqrt(var + EPS) * gamma + beta
    return (y @ w + wb).astype(x.dtype)


def prenorm_ref_matched(x, gamma, beta, w, wb):
    """Reference matching the kernel's precision: f32 LN, bf16 matmul, f32 acc."""
    xf = x.astype(jnp.float32)
    mean = jnp.mean(xf, axis=-1, keepdims=True)
    var = jnp.mean((xf - mean) ** 2, axis=-1, keepdims=True)
    y = (xf - mean) * jax.lax.rsqrt(var + EPS) * gamma + beta
    out = jnp.dot(y.astype(jnp.bfloat16), w.astype(jnp.bfloat16),
                  preferred_element_type=jnp.float32) + wb
    return out.astype(x.dtype)


if __name__ == "__main__":
    # Small shapes consistent with the module; D=128 keeps stores lane-dense.
    B, S, D = 2, 8, 128  # batch, seq, embed_dim

    key = jax.random.PRNGKey(0)
    kx, kw, kb = jax.random.split(key, 3)

    x = jax.random.normal(kx, (B, S, D), dtype=jnp.float32)

    # LayerNorm params: PyTorch default init (ones / zeros).
    gamma = jnp.ones((D,), dtype=jnp.float32)
    beta = jnp.zeros((D,), dtype=jnp.float32)

    # fn = Linear(D, D): deterministic synthetic init.
    # TODO(synk): `fn` is an arbitrary callable in the PyTorch module; only the
    # Linear instantiation is fused here.
    w = jax.random.normal(kw, (D, D), dtype=jnp.float32) * (1.0 / jnp.sqrt(D))
    wb = jax.random.normal(kb, (D,), dtype=jnp.float32) * 0.01

    out = prenorm(x, gamma, beta, w, wb)
    out = jax.block_until_ready(out)
    assert out.shape == (B, S, D)

    # Tight check vs the precision-matched reference (bf16 MXU operands, f32 acc).
    ref_m = prenorm_ref_matched(x, gamma, beta, w, wb)
    assert jnp.allclose(out, ref_m, atol=1e-4, rtol=1e-4), "mismatch vs matched ref"

    # Loose check vs the full-f32 reference (bf16 operand rounding only).
    ref_f = prenorm_ref_f32(x, gamma, beta, w, wb)
    assert jnp.allclose(out, ref_f, atol=5e-2, rtol=5e-2), "mismatch vs f32 ref"

    print("KERNEL_OK")
</pallas_src>

<mosaic_0001>
module attributes {stable_mosaic.version = 11 : i64} {
  func.func @prenorm_kernel(%arg0: i32, %arg1: i32, %arg2: memref<16x128xf32, #tpu.memory_space<vmem>>, %arg3: memref<1x128xf32, #tpu.memory_space<vmem>>, %arg4: memref<1x128xf32, #tpu.memory_space<vmem>>, %arg5: memref<128x128xbf16, #tpu.memory_space<vmem>>, %arg6: memref<1x128xf32, #tpu.memory_space<vmem>>, %arg7: memref<16x128xf32, #tpu.memory_space<vmem>>, %arg8: memref<16x128xbf16, #tpu.memory_space<vmem>>) attributes {dimension_semantics = [#tpu.dimension_semantics<parallel>, #tpu.dimension_semantics<arbitrary>], iteration_bounds = array<i64: 1, 1>, scalar_prefetch = 0 : i64, scratch_operands = 1 : i64, tpu.core_type = #tpu.core_type<tc>, window_params = [{transform_indices = @transform_0, window_bounds = array<i64: 16, 128>}, {pipeline_mode = #tpu.pipeline_mode<synchronous>, transform_indices = @transform_1, window_bounds = array<i64: 1, 128>}, {pipeline_mode = #tpu.pipeline_mode<synchronous>, transform_indices = @transform_2, window_bounds = array<i64: 1, 128>}, {transform_indices = @transform_3, window_bounds = array<i64: 128, 128>}, {transform_indices = @transform_4, window_bounds = array<i64: 1, 128>}, {transform_indices = @transform_5, window_bounds = array<i64: 16, 128>}]} {
    %c0_i32 = arith.constant 0 : i32
    %0 = arith.cmpi eq, %arg1, %c0_i32 : i32
    %1 = arith.extui %0 : i1 to i32
    %c0_i32_0 = arith.constant 0 : i32
    %2 = arith.cmpi ne, %1, %c0_i32_0 : i32
    scf.if %2 {
      %c0_8 = arith.constant 0 : index
      %c0_9 = arith.constant 0 : index
      %10 = vector.load %arg2[%c0_8, %c0_9] : memref<16x128xf32, #tpu.memory_space<vmem>>, vector<16x128xf32>
      %cst_10 = arith.constant dense<0.000000e+00> : vector<16xf32>
      %11 = vector.multi_reduction <add>, %10, %cst_10 [1] : vector<16x128xf32> to vector<16xf32>
      %12 = vector.shape_cast %11 : vector<16xf32> to vector<16x1xf32>
      %cst_11 = arith.constant 1.280000e+02 : f32
      %13 = vector.broadcast %cst_11 : f32 to vector<16x1xf32>
      %14 = arith.divf %12, %13 : vector<16x1xf32>
      %15 = vector.broadcast %14 : vector<16x1xf32> to vector<16x128xf32>
      %16 = arith.subf %10, %15 : vector<16x128xf32>
      %17 = arith.mulf %16, %16 : vector<16x128xf32>
      %cst_12 = arith.constant dense<0.000000e+00> : vector<16xf32>
      %18 = vector.multi_reduction <add>, %17, %cst_12 [1] : vector<16x128xf32> to vector<16xf32>
      %19 = vector.shape_cast %18 : vector<16xf32> to vector<16x1xf32>
      %cst_13 = arith.constant 1.280000e+02 : f32
      %20 = vector.broadcast %cst_13 : f32 to vector<16x1xf32>
      %21 = arith.divf %19, %20 : vector<16x1xf32>
      %cst_14 = arith.constant 9.99999974E-6 : f32
      %22 = vector.broadcast %cst_14 : f32 to vector<16x1xf32>
      %23 = arith.addf %21, %22 : vector<16x1xf32>
      %24 = math.rsqrt %23 : vector<16x1xf32>
      %25 = vector.broadcast %24 : vector<16x1xf32> to vector<16x128xf32>
      %26 = arith.mulf %16, %25 : vector<16x128xf32>
      %c0_15 = arith.constant 0 : index
      %c0_16 = arith.constant 0 : index
      %27 = vector.load %arg3[%c0_15, %c0_16] : memref<1x128xf32, #tpu.memory_space<vmem>>, vector<1x128xf32>
      %28 = vector.broadcast %27 : vector<1x128xf32> to vector<16x128xf32>
      %29 = arith.mulf %26, %28 : vector<16x128xf32>
      %c0_17 = arith.constant 0 : index
      %c0_18 = arith.constant 0 : index
      %30 = vector.load %arg4[%c0_17, %c0_18] : memref<1x128xf32, #tpu.memory_space<vmem>>, vector<1x128xf32>
      %31 = vector.broadcast %30 : vector<1x128xf32> to vector<16x128xf32>
      %32 = arith.addf %29, %31 : vector<16x128xf32>
      %33 = arith.truncf %32 : vector<16x128xf32> to vector<16x128xbf16>
      %c0_19 = arith.constant 0 : index
      %c0_20 = arith.constant 0 : index
      %34 = vector.load %arg8[%c0_19, %c0_20] : memref<16x128xbf16, #tpu.memory_space<vmem>>, vector<16x128xbf16>
      tpu.vector_store %arg8[%c0_19, %c0_20], %33 {strides = array<i32>} : memref<16x128xbf16, #tpu.memory_space<vmem>>, vector<16x128xbf16>,
    } else {
    }
    %c0 = arith.constant 0 : index
    %c0_1 = arith.constant 0 : index
    %3 = vector.load %arg8[%c0, %c0_1] : memref<16x128xbf16, #tpu.memory_space<vmem>>, vector<16x128xbf16>
    %c0_2 = arith.constant 0 : index
    %c0_3 = arith.constant 0 : index
    %4 = vector.load %arg5[%c0_2, %c0_3] : memref<128x128xbf16, #tpu.memory_space<vmem>>, vector<128x128xbf16>
    %cst = arith.constant dense<0.000000e+00> : vector<16x128xf32>
    %5 = tpu.matmul %3, %4, %cst {dimension_numbers = #tpu.dot_dimension_numbers<[1], [0], [0], [1], [0, 0, 1, 1], [], []>} : vector<16x128xbf16>, vector<128x128xbf16>, vector<16x128xf32> -> vector<16x128xf32>
    %c0_4 = arith.constant 0 : index
    %c0_5 = arith.constant 0 : index
    %6 = vector.load %arg6[%c0_4, %c0_5] : memref<1x128xf32, #tpu.memory_space<vmem>>, vector<1x128xf32>
    %7 = vector.broadcast %6 : vector<1x128xf32> to vector<16x128xf32>
    %8 = arith.addf %5, %7 : vector<16x128xf32>
    %c0_6 = arith.constant 0 : index
    %c0_7 = arith.constant 0 : index
    %9 = vector.load %arg7[%c0_6, %c0_7] : memref<16x128xf32, #tpu.memory_space<vmem>>, vector<16x128xf32>
    tpu.vector_store %arg7[%c0_6, %c0_7], %8 {strides = array<i32>} : memref<16x128xf32, #tpu.memory_space<vmem>>, vector<16x128xf32>,
    return
  }
  func.func @transform_0(%arg0: i32, %arg1: i32) -> (i32, i32) {
    %c0_i32 = arith.constant 0 : i32
    %c0_i32_0 = arith.constant 0 : i32
    return %arg0, %c0_i32 : i32, i32
  }
  func.func @transform_1(%arg0: i32, %arg1: i32) -> (i32, i32) {
    %c0_i32 = arith.constant 0 : i32
    %c0_i32_0 = arith.constant 0 : i32
    %c0_i32_1 = arith.constant 0 : i32
    return %c0_i32, %c0_i32_0 : i32, i32
  }
  func.func @transform_2(%arg0: i32, %arg1: i32) -> (i32, i32) {
    %c0_i32 = arith.constant 0 : i32
    %c0_i32_0 = arith.constant 0 : i32
    %c0_i32_1 = arith.constant 0 : i32
    return %c0_i32, %c0_i32_0 : i32, i32
  }
  func.func @transform_3(%arg0: i32, %arg1: i32) -> (i32, i32) {
    %c0_i32 = arith.constant 0 : i32
    %c0_i32_0 = arith.constant 0 : i32
    return %c0_i32, %arg1 : i32, i32
  }
  func.func @transform_4(%arg0: i32, %arg1: i32) -> (i32, i32) {
    %c0_i32 = arith.constant 0 : i32
    %c0_i32_0 = arith.constant 0 : i32
    return %c0_i32, %arg1 : i32, i32
  }
  func.func @transform_5(%arg0: i32, %arg1: i32) -> (i32, i32) {
    %c0_i32 = arith.constant 0 : i32
    return %arg0, %arg1 : i32, i32
  }
}

</mosaic_0001>

<llo_original>
// kernel: prenorm.1
$region0: #{prenorm.1}
  #allocation0 [shape = 'u32[]', space=smem, size = 0x4, offset = 0x4, fixed_abs, tag = 'smem constant byte address 0x4 - core index']
  #allocation1 [shape = 'u32[144,128]{1,0:T(1,128)}', space=vmem, size = 0x12000, scoped, tag = 'internal scratch']
  #allocation2 [shape = 'bf16[16,128]{1,0:T(16,128)(2,1)}', space=vmem, size = 0x1000, scoped, tag = 'scratch operand']
  %s0 = inlined_call_operand.vmem [shape: f32[16,128], index: 0, kind: input, shape index: {}]
  %s1 = inlined_call_operand.vmem [shape: f32[1,128], index: 1, kind: input, shape index: {}]
  %s2 = inlined_call_operand.vmem [shape: f32[1,128], index: 2, kind: input, shape index: {}]
  %s3 = inlined_call_operand.vmem [shape: bf16[128,128], index: 3, kind: input, shape index: {}]
  %s4 = inlined_call_operand.vmem [shape: f32[1,128], index: 4, kind: input, shape index: {}]
  %s5 = inlined_call_operand.hbm [shape: f32[16,128], index: 5, kind: output, shape index: {}]
  %s6 = sld [smem:[#allocation0]]
  $region34: #{prenorm.1} parent=0
    _
  %s8 = ssub.s32 1, %s6
  %s9 = scalar_select 0, %s8, %s6
  $region1: #{prenorm.1} parent=0
    #allocation3 [shape = 'u8[8192]{0}', space=vmem, size = 0x2000, scoped, tag = 'output window, operand 0, single buffered']
    #allocation4 [shape = 's32[1]{0}', space=sflag, size = 0x4, scoped, tag = 'scoped memory for prenorm.1']
    %10 = vsyncpa [#allocation4], 0
    // Predicated region
    $region2: #{prenorm.1} parent=1 // pred_check
      _
    $region3: #{prenorm.1} parent=1 // pred_check_branch
      %12 = sbr.rel (0) target = $region5
    $region4: #{prenorm.1} parent=1 // pred_region
      _
    $region5: #{prenorm.1} parent=1 // pred_fallthru
      _
    // Predicated region
    $region6: #{prenorm.1} parent=1 // pred_check
      _
    $region7: #{prenorm.1} parent=1 // pred_check_branch
      %14 = sbr.rel (0) target = $region9
    $region8: #{prenorm.1} parent=1 // pred_region
      _
    $region9: #{prenorm.1} parent=1 // pred_fallthru
      _
    // Predicated region
    $region10: #{prenorm.1} parent=1 // pred_check
      _
    $region11: #{prenorm.1} parent=1 // pred_check_branch
      %16 = sbr.rel (0) target = $region13
    $region12: #{prenorm.1} parent=1 // pred_region
      _
    $region13: #{prenorm.1} parent=1 // pred_fallthru
      _
    // Predicated region
    $region14: #{prenorm.1} parent=1 // pred_check
      _
    $region15: #{prenorm.1} parent=1 // pred_check_branch
      %18 = sbr.rel (0) target = $region17
    $region16: #{prenorm.1} parent=1 // pred_region
      _
    $region17: #{prenorm.1} parent=1 // pred_fallthru
      _
    // Predicated region
    $region18: #{prenorm.1} parent=1 // pred_check
      _
    $region19: #{prenorm.1} parent=1 // pred_check_branch
      %20 = sbr.rel (0) target = $region21
    $region20: #{prenorm.1} parent=1 // pred_region
      _
    $region21: #{prenorm.1} parent=1 // pred_fallthru
      _
    %p22 = scmp.eq.s32.totalorder 0, 0
    // Predicated region
    $region22: #{prenorm.1} parent=1 // pred_check
      %p23 = pneg %p22
    $region23: #{prenorm.1} parent=1 // pred_check_branch
      %25 = sbr.rel (%p23) target = $region25
    $region24: #{prenorm.1} parent=1 // pred_region
      %v26 = vld [vmem:[%s0] sm:$0xff]
      %v27 = vld [vmem:[%s0 + $0x8] sm:$0xff]
      %28 = vadd.xlane.f32.xlu0 %v26
      %v29 = vpop.xlane.xlu0 %28
      %30 = vadd.xlane.f32.xlu0 %v27
      %v31 = vpop.xlane.xlu0 %30
      %v32 = vrcp.pop 128.0
      %v33 = vmul.f32 %v29, %v32
      %v34 = vmul.f32 %v31, %v32
      %v35 = vsub.f32 %v26, %v33
      %v36 = vsub.f32 %v27, %v34
      %v37 = vmul.f32 %v35, %v35
      %v38 = vmul.f32 %v36, %v36
      %39 = vadd.xlane.f32.xlu0 %v37
      %v40 = vpop.xlane.xlu0 %39
      %41 = vadd.xlane.f32.xlu0 %v38
      %v42 = vpop.xlane.xlu0 %41
      %v43 = vmul.f32 %v40, %v32
      %v44 = vmul.f32 %v42, %v32
      %v45 = vadd.f32 %v43, 1e-05
      %v46 = vadd.f32 %v44, 1e-05
      %v47 = vrsqrt.pop %v45
      %v48 = vrsqrt.pop %v46
      %v49 = vmul.f32 %v35, %v47
      %v50 = vmul.f32 %v36, %v48
      %v51 = vld [vmem:[%s1] sm:$0x1]
      %v53 = vlaneseq
      %v54 = vshrl.u32 %v53, 7
      %v55 = vsub.s32 0, %v54
      %v56 = vrot.slane %v51, %v55
      %v58 = vmul.f32 %v49, %v56
      %v59 = vmul.f32 %v50, %v56
      %v60 = vld [vmem:[%s2] sm:$0x1]
      %v62 = vlaneseq
      %v63 = vshrl.u32 %v62, 7
      %v64 = vsub.s32 0, %v63
      %v65 = vrot.slane %v60, %v64
      %v67 = vadd.f32 %v58, %v65
      %v68 = vadd.f32 %v59, %v65
      %v69 = vpack.c.bf16 %v68, %v67
      %70 = vst [vmem:[#allocation2] sm:$0xff] %v69
    $region25: #{prenorm.1} parent=1 // pred_fallthru
      _
    %v71 = vld [vmem:[#allocation2] sm:$0xff]
    %v72 = vld [vmem:[%s3] sm:$0xf]
    %v73 = vld [vmem:[%s3 + $0x4] sm:$0xf]
    %v74 = vld [vmem:[%s3 + $0x8] sm:$0xf]
    %v75 = vld [vmem:[%s3 + $0xc] sm:$0xf]
    %v76 = vld [vmem:[%s3 + $0x10] sm:$0xf]
    %v77 = vld [vmem:[%s3 + $0x14] sm:$0xf]
    %v78 = vld [vmem:[%s3 + $0x18] sm:$0xf]
    %v79 = vld [vmem:[%s3 + $0x1c] sm:$0xf]
    %v80 = vld [vmem:[%s3 + $0x20] sm:$0xf]
    %v81 = vld [vmem:[%s3 + $0x24] sm:$0xf]
    %v82 = vld [vmem:[%s3 + $0x28] sm:$0xf]
    %v83 = vld [vmem:[%s3 + $0x2c] sm:$0xf]
    %v84 = vld [vmem:[%s3 + $0x30] sm:$0xf]
    %v85 = vld [vmem:[%s3 + $0x34] sm:$0xf]
    %v86 = vld [vmem:[%s3 + $0x38] sm:$0xf]
    %v87 = vld [vmem:[%s3 + $0x3c] sm:$0xf]
    %v88 = vld [vmem:[%s4] sm:$0x1]
    %v90 = vlaneseq
    %v91 = vshrl.u32 %v90, 7
    %v92 = vsub.s32 0, %v91
    %v93 = vrot.slane %v88, %v92
    %v111 = vunpack.c.l.b16 %v72
    %v112 = vunpack.c.l.b16 %v73
    %v113 = vunpack.c.l.b16 %v74
    %v114 = vunpack.c.l.b16 %v75
    %v115 = vunpack.c.l.b16 %v76
    %v116 = vunpack.c.l.b16 %v77
    %v117 = vunpack.c.l.b16 %v78
    %v118 = vunpack.c.l.b16 %v79
    %v119 = vunpack.c.l.b16 %v80
    %v120 = vunpack.c.l.b16 %v81
    %v121 = vunpack.c.l.b16 %v82
    %v122 = vunpack.c.l.b16 %v83
    %v123 = vunpack.c.l.b16 %v84
    %v124 = vunpack.c.l.b16 %v85
    %v125 = vunpack.c.l.b16 %v86
    %v126 = vunpack.c.l.b16 %v87
    %v127 = vpack.c.b16 %v112, %v111
    %v128 = vpack.c.b16 %v114, %v113
    %v129 = vpack.c.b16 %v116, %v115
    %v130 = vpack.c.b16 %v118, %v117
    %v131 = vpack.c.b16 %v120, %v119
    %v132 = vpack.c.b16 %v122, %v121
    %v133 = vpack.c.b16 %v124, %v123
    %v134 = vpack.c.b16 %v126, %v125
    %143 = vmatprep.subr.bf16.mxu0 0
    %144 = vmatpush1.bf16.msra.mxu0 %v127
    %145 = vmatprep.subr.bf16.mxu0 0
    %146 = vmatpush1.bf16.msra.mxu0 %v128
    %147 = vmatprep.subr.bf16.mxu0 0
    %148 = vmatpush1.bf16.msra.mxu0 %v129
    %149 = vmatprep.subr.bf16.mxu0 0
    %150 = vmatpush1.bf16.msra.mxu0 %v130
    %151 = vmatprep.subr.bf16.mxu0 0
    %152 = vmatpush1.bf16.msra.mxu0 %v131
    %153 = vmatprep.subr.bf16.mxu0 0
    %154 = vmatpush1.bf16.msra.mxu0 %v132
    %155 = vmatprep.subr.bf16.mxu0 0
    %156 = vmatpush1.bf16.msra.mxu0 %v133
    %157 = vmatprep.subr.bf16.mxu0 0
    %158 = vmatpush1.bf16.msra.mxu0 %v134
    %159 = vmatprep.subr.bf16.mxu0 0
    %160 = vmatpush1.bf16.msra.mxu0 0
    %161 = vmatprep.subr.bf16.mxu0 0
    %162 = vmatpush1.bf16.msra.mxu0 0
    %163 = vmatprep.subr.bf16.mxu0 0
    %164 = vmatpush1.bf16.msra.mxu0 0
    %165 = vmatprep.subr.bf16.mxu0 0
    %166 = vmatpush1.bf16.msra.mxu0 0
    %167 = vmatprep.subr.bf16.mxu0 0
    %168 = vmatpush1.bf16.msra.mxu0 0
    %169 = vmatprep.subr.bf16.mxu0 0
    %170 = vmatpush1.bf16.msra.mxu0 0
    %171 = vmatprep.subr.bf16.mxu0 0
    %172 = vmatpush1.bf16.msra.mxu0 0
    %173 = vmatprep.subr.bf16.mxu0 0
    %174 = vmatpush1.bf16.msra.mxu0 0
    %175 = vmatprep.mubr.bf16.mxu0 0
    %176 = vmatmul.mubr.bf16.gmra.mrb[0].mxu0 %v71
    %v177 = vpop.f32.mrb[0].mxu0
    %v178 = vadd.f32 %v93, %v177
    %v179 = vpop.f32.mrb[0].mxu0
    %v180 = vpop.f32.mrb[0].mxu0
    %v181 = vadd.f32 %v93, %v180
    %v182 = vpop.f32.mrb[0].mxu0
    %183 = vdwg.mxu0
    %184 = vst [vmem:[#allocation3] sm:$0xff] %v178
    %185 = vst [vmem:[#allocation3 + $0x8] sm:$0xff] %v181
    // Predicated region
    $region26: #{prenorm.1} parent=1 // pred_check
      _
    $region27: #{prenorm.1} parent=1 // pred_check_branch
      %187 = sbr.rel (0) target = $region29
    $region28: #{prenorm.1} parent=1 // pred_region
      %s189 = ssub.s32 256, 256
      %190 = vsyncadd [#allocation4], %s189
      %s191 = sshll.u32 [#allocation3], 4
      %s192 = int_to_ptr.vmem [resolvable:$true] %s191
      %197 = dma.vmem_to_hbm [thread:$0]  %s192, 256, %s5, [#allocation4], 128, 128, 8
    $region29: #{prenorm.1} parent=1 // pred_fallthru
      _
    // Predicated region
    $region30: #{prenorm.1} parent=1 // pred_check
      _
    $region31: #{prenorm.1} parent=1 // pred_check_branch
      %199 = sbr.rel (0) target = $region33
    $region32: #{prenorm.1} parent=1 // pred_region
      %200 = dma.done [#allocation4], 256
    $region33: #{prenorm.1} parent=1 // pred_fallthru
      _
    %201 = vsyncpa [#allocation4], 1

</llo_original>
